<compile_context>
chip_gen: v6e
topology: v6e:2x2x1
jax: 0.10.0
libtpu: 0.0.40
codegen_flags: <defaults>
</compile_context>

<pallas_src>
from functools import partial

import jax
import jax.numpy as jnp
import numpy as np
from jax.experimental import pallas as pl
from jax.experimental.pallas import tpu as pltpu

NODE_FEATURE_DIMS = [119, 5, 12, 12, 10, 6, 6, 2, 2]
EDGE_FEATURE_DIMS = [5, 6, 2]
NODE_EMB = 16
EDGE_EMB = 2
HIDDEN = 32
NEG_SLOPE = 0.2      # GATConv default negative_slope
MASK_NEG = -1e30     # baked into alpha for non-edges; exp underflows to 0 in f32


def _vmem_spec():
    return pl.BlockSpec(memory_space=pltpu.MemorySpace.VMEM)


# ----------------------------- fused Pallas kernel -------------------------- #

def _fused_gat_kernel(h0_ref, w_ref, attsd_ref, misc_ref, alpha_ref, assign_ref, o_ref):
    """3x GATConv (heads=1, edge_dim=2) + mean-pool + Linear, all in VMEM.

    h0:[N,H] (node emb zero-padded 16->H)   w:[3,H,H] (w1 zero-padded on K)
    attsd:[3,H,2] (att_src|att_dst)         misc:[7,H] (bias x3, lin_w rows x3, lin_b@[6,0])
    alpha:[3,N,N] edge logits (MASK_NEG on non-edges, 'mean' self-loop fill on diag)
    assign:[B,N] normalized pooling matrix  out:[B,1]
    """
    misc = misc_ref[...]                                                         # [7, H]

    def gat(x, layer):
        xl = jnp.dot(x, w_ref[layer], preferred_element_type=jnp.float32)        # [N, H]
        # src/dst attention coefficients via one MXU matmul (no XLU reductions)
        sd = jnp.dot(xl, attsd_ref[layer], preferred_element_type=jnp.float32)   # [N, 2]
        a_src = sd[:, 0:1]                                                        # [N, 1]
        a_dst = sd[:, 1:2]                                                        # [N, 1]
        logits = a_dst + a_src.T + alpha_ref[layer]                               # [dst, src]
        logits = jnp.maximum(logits, NEG_SLOPE * logits)                          # leaky_relu
        logits = logits - jnp.max(logits, axis=-1, keepdims=True)                 # softmax(src)
        p = jnp.exp(logits)                                                       # non-edges -> 0
        attn = p * pl.reciprocal(jnp.sum(p, axis=-1, keepdims=True), approx=True)
        return (jnp.dot(attn, xl, preferred_element_type=jnp.float32)
                + misc[layer:layer + 1, :])                                       # + bias

    h1 = gat(h0_ref[...], 0)
    h2 = gat(h1, 1)
    h3 = gat(h2, 2)

    # lin(gap(cat(h1,h2,h3))) without the concat / [3H,1] tail:
    #   out[b] = sum_n assign[b,n] * sum_h (h1*lw0 + h2*lw1 + h3*lw2)[n,h] + lb
    t = h1 * misc[3:4, :] + h2 * misc[4:5, :] + h3 * misc[5:6, :]                 # [N, H]
    pooled = jnp.dot(assign_ref[...], t, preferred_element_type=jnp.float32)      # [B, H]
    o_ref[...] = jnp.sum(pooled, axis=-1, keepdims=True) + misc[6:7, 0:1]         # [B, 1]


def fused_gat(h0p, w_all, att_sd, misc, alpha, assign):
    bsz = assign.shape[0]
    # TODO(synk): for batched graphs make the output lane-dense; [B,1] is fine at B=2.
    return pl.pallas_call(
        _fused_gat_kernel,
        out_shape=jax.ShapeDtypeStruct((bsz, 1), jnp.float32),
        in_specs=[_vmem_spec()] * 6,
        out_specs=_vmem_spec(),
    )(h0p, w_all, att_sd, misc, alpha, assign)


# ------------------------------ parameters --------------------------------- #

def _xavier_uniform(key, shape, fan_in, fan_out):
    lim = (6.0 / (fan_in + fan_out)) ** 0.5
    return jax.random.uniform(key, shape, jnp.float32, -lim, lim)


def init_params(key):
    keys = iter(jax.random.split(key, 64))
    params = {}

    # node / edge encoders: per-table xavier init, then concat into one table
    node_tabs = [_xavier_uniform(next(keys), (d, NODE_EMB), d, NODE_EMB)
                 for d in NODE_FEATURE_DIMS]
    edge_tabs = [_xavier_uniform(next(keys), (d, EDGE_EMB), d, EDGE_EMB)
                 for d in EDGE_FEATURE_DIMS]
    params["node_table"] = jnp.concatenate(node_tabs, axis=0)
    params["edge_table"] = jnp.concatenate(edge_tabs, axis=0)
    params["node_offsets"] = jnp.asarray(
        np.cumsum([0] + NODE_FEATURE_DIMS[:-1]), dtype=jnp.int32)
    params["edge_offsets"] = jnp.asarray(
        np.cumsum([0] + EDGE_FEATURE_DIMS[:-1]), dtype=jnp.int32)

    # three GATConv layers: w1 zero-padded on K so all layers share one [3,H,H]
    w1 = _xavier_uniform(next(keys), (NODE_EMB, HIDDEN), NODE_EMB, HIDDEN)
    w2 = _xavier_uniform(next(keys), (HIDDEN, HIDDEN), HIDDEN, HIDDEN)
    w3 = _xavier_uniform(next(keys), (HIDDEN, HIDDEN), HIDDEN, HIDDEN)
    w1p = jnp.pad(w1, ((0, HIDDEN - NODE_EMB), (0, 0)))
    params["w_all"] = jnp.stack([w1p, w2, w3])                                  # [3, H, H]

    params["w_edge"] = jnp.stack(
        [_xavier_uniform(next(keys), (EDGE_EMB, HIDDEN), EDGE_EMB, HIDDEN) for _ in range(3)])
    att_src = jnp.stack(
        [_xavier_uniform(next(keys), (HIDDEN,), 1, HIDDEN) for _ in range(3)])  # [3, H]
    att_dst = jnp.stack(
        [_xavier_uniform(next(keys), (HIDDEN,), 1, HIDDEN) for _ in range(3)])  # [3, H]
    params["att_edge"] = jnp.stack(
        [_xavier_uniform(next(keys), (HIDDEN,), 1, HIDDEN) for _ in range(3)])  # [3, H]
    params["att_sd"] = jnp.stack([att_src, att_dst], axis=-1)                   # [3, H, 2]

    # misc pack: rows 0-2 = per-layer conv bias, rows 3-5 = lin_w (per-layer [H]
    # rows, matching cat(h1,h2,h3) order), row 6 col 0 = lin_b.
    bias = jnp.zeros((3, HIDDEN), jnp.float32)
    lim = 1.0 / (3 * HIDDEN) ** 0.5
    lin_w = jax.random.uniform(next(keys), (3 * HIDDEN, 1), jnp.float32, -lim, lim)
    lin_b = jax.random.uniform(next(keys), (1, 1), jnp.float32, -lim, lim)
    misc = jnp.zeros((7, HIDDEN), jnp.float32)
    misc = misc.at[0:3].set(bias)
    misc = misc.at[3:6].set(lin_w.reshape(3, HIDDEN))
    misc = misc.at[6, 0].set(lin_b[0, 0])
    params["misc"] = misc
    return params


# ------------------------------ JAX glue ----------------------------------- #

def _encode(table, offsets, idx_int):
    """Single gather: sum of per-field embeddings."""
    emb = table[idx_int + offsets[None, :]]        # [rows, fields, emb]
    return jnp.sum(emb, axis=1)                    # [rows, emb]


def build_edge_alphas(num_nodes, edge_index, edge_emb, w_edges, att_edges):
    """Dense per-layer edge-attention logits [3, N, N] with the mask baked in.

    Reproduces GATConv's add_self_loops(fill_value='mean'): self-loop attribute of
    node i = mean of attributes of edges pointing into i. Assumes a simple graph
    (no duplicate edges, no pre-existing self loops).
    """
    # TODO(synk): at scale, build this in-kernel from scalar-prefetched edge lists
    # (PrefetchScalarGridSpec) instead of dense scatters + an HBM round-trip.
    src, dst = edge_index[0], edge_index[1]
    ones = jnp.ones((edge_emb.shape[0],), jnp.float32)
    counts = jnp.zeros((num_nodes,), jnp.float32).at[dst].add(ones)
    sums = jnp.zeros((num_nodes, EDGE_EMB), jnp.float32).at[dst].add(edge_emb)
    loop_attr = sums / jnp.maximum(counts, 1.0)[:, None]                       # [N, 2]

    # all three layers' edge logits in one batched contraction
    a_e = jnp.einsum("ec,lch,lh->le", edge_emb, w_edges, att_edges)            # [3, E]
    a_loop = jnp.einsum("nc,lch,lh->ln", loop_attr, w_edges, att_edges)        # [3, N]

    alpha = jnp.full((3, num_nodes, num_nodes), MASK_NEG, jnp.float32)
    alpha = alpha.at[:, dst, src].set(a_e)
    diag = jnp.arange(num_nodes)
    alpha = alpha.at[:, diag, diag].set(a_loop)
    return alpha


@partial(jax.jit, static_argnames=("num_graphs",))
def gat_model_forward(params, X, edge_index, batch, Ed_f, *, num_graphs):
    n = X.shape[0]
    h0 = _encode(params["node_table"], params["node_offsets"], X)          # NodeEncoder(16)
    h0p = jnp.pad(h0, ((0, 0), (0, HIDDEN - NODE_EMB)))                    # [N, H] (zero-padded)
    e_emb = _encode(params["edge_table"], params["edge_offsets"], Ed_f)    # EdgeEncoder(2)

    alpha = build_edge_alphas(n, edge_index, e_emb,
                              params["w_edge"], params["att_edge"])        # [3, N, N]

    # gap == global_mean_pool -> normalized one-hot assignment [B, N]
    onehot = (batch[None, :] == jnp.arange(num_graphs)[:, None]).astype(jnp.float32)
    assign = onehot / jnp.maximum(jnp.sum(onehot, axis=1, keepdims=True), 1.0)

    return fused_gat(h0p, params["w_all"], params["att_sd"], params["misc"],
                     alpha, assign)                                        # [B, 1]


# -------------------------------- main -------------------------------------- #

if __name__ == "__main__":
    key = jax.random.PRNGKey(0)
    pkey, xkey, ekey = jax.random.split(key, 3)
    params = init_params(pkey)

    num_graphs = 2
    nodes_per_graph = 8
    n = num_graphs * nodes_per_graph

    # two 8-node undirected rings (edges both directions), no self loops / duplicates
    srcs, dsts = [], []
    for g in range(num_graphs):
        base = g * nodes_per_graph
        for i in range(nodes_per_graph):
            a = base + i
            b = base + (i + 1) % nodes_per_graph
            srcs += [a, b]
            dsts += [b, a]
    edge_index = jnp.array([srcs, dsts], dtype=jnp.int32)
    num_edges = edge_index.shape[1]

    batch = jnp.repeat(jnp.arange(num_graphs, dtype=jnp.int32), nodes_per_graph)

    xkeys = jax.random.split(xkey, len(NODE_FEATURE_DIMS))
    X = jnp.stack(
        [jax.random.randint(xkeys[i], (n,), 0, d) for i, d in enumerate(NODE_FEATURE_DIMS)],
        axis=1,
    ).astype(jnp.int32)
    ekeys = jax.random.split(ekey, len(EDGE_FEATURE_DIMS))
    Ed_f = jnp.stack(
        [jax.random.randint(ekeys[i], (num_edges,), 0, d) for i, d in enumerate(EDGE_FEATURE_DIMS)],
        axis=1,
    ).astype(jnp.int32)

    out = gat_model_forward(params, X, edge_index, batch, Ed_f, num_graphs=num_graphs)
    jax.block_until_ready(out)
    assert out.shape == (num_graphs, 1) and out.dtype == jnp.float32
    print("KERNEL_OK")
</pallas_src>

<mosaic_0001>
module attributes {stable_mosaic.version = 11 : i64} {
  func.func private @main(%arg0: i32) attributes {dimension_semantics = [#tpu.dimension_semantics<core_parallel>], iteration_bounds = array<i64: 2>, tpu.core_type = #tpu.core_type<sc_scalar_subcore>, window_params = []} {
    return
  }
}

module attributes {stable_mosaic.version = 11 : i64} {
  func.func private @main(%arg0: i32) attributes {dimension_semantics = [#tpu.dimension_semantics<core_parallel>], iteration_bounds = array<i64: 2>, tpu.core_type = #tpu.core_type<sc_scalar_subcore>, window_params = []} {
    return
  }
}

module attributes {stable_mosaic.version = 11 : i64} {
  func.func @_fused_gat_kernel(%arg0: memref<16x32xf32, #tpu.memory_space<vmem>>, %arg1: memref<3x32x32xf32, #tpu.memory_space<vmem>>, %arg2: memref<3x32x2xf32, #tpu.memory_space<vmem>>, %arg3: memref<7x32xf32, #tpu.memory_space<vmem>>, %arg4: memref<3x16x16xf32, #tpu.memory_space<vmem>>, %arg5: memref<2x16xf32, #tpu.memory_space<vmem>>, %arg6: memref<2x1xf32, #tpu.memory_space<vmem>>) attributes {dimension_semantics = [], scalar_prefetch = 0 : i64, scratch_operands = 0 : i64, tpu.core_type = #tpu.core_type<tc>} {
    %c0 = arith.constant 0 : index
    %c0_0 = arith.constant 0 : index
    %0 = vector.load %arg3[%c0, %c0_0] : memref<7x32xf32, #tpu.memory_space<vmem>>, vector<7x32xf32>
    %c0_1 = arith.constant 0 : index
    %c0_2 = arith.constant 0 : index
    %1 = vector.load %arg0[%c0_1, %c0_2] : memref<16x32xf32, #tpu.memory_space<vmem>>, vector<16x32xf32>
    %c0_3 = arith.constant 0 : index
    %c0_4 = arith.constant 0 : index
    %c0_5 = arith.constant 0 : index
    %2 = vector.load %arg1[%c0_3, %c0_4, %c0_5] : memref<3x32x32xf32, #tpu.memory_space<vmem>>, vector<1x32x32xf32>
    %3 = vector.shape_cast %2 : vector<1x32x32xf32> to vector<32x32xf32>
    %cst = arith.constant dense<0.000000e+00> : vector<16x32xf32>
    %4 = tpu.matmul %1, %3, %cst {dimension_numbers = #tpu.dot_dimension_numbers<[1], [0], [0], [1], [0, 0, 1, 1], [], []>} : vector<16x32xf32>, vector<32x32xf32>, vector<16x32xf32> -> vector<16x32xf32>
    %c0_6 = arith.constant 0 : index
    %c0_7 = arith.constant 0 : index
    %c0_8 = arith.constant 0 : index
    %5 = vector.load %arg2[%c0_6, %c0_7, %c0_8] : memref<3x32x2xf32, #tpu.memory_space<vmem>>, vector<1x32x2xf32>
    %6 = vector.shape_cast %5 : vector<1x32x2xf32> to vector<32x2xf32>
    %cst_9 = arith.constant dense<0.000000e+00> : vector<16x2xf32>
    %7 = tpu.matmul %4, %6, %cst_9 {dimension_numbers = #tpu.dot_dimension_numbers<[1], [0], [0], [1], [0, 0, 1, 1], [], []>} : vector<16x32xf32>, vector<32x2xf32>, vector<16x2xf32> -> vector<16x2xf32>
    %8 = vector.extract_strided_slice %7 {offsets = [0, 0], sizes = [16, 1], strides = [1, 1]} : vector<16x2xf32> to vector<16x1xf32>
    %9 = vector.extract_strided_slice %7 {offsets = [0, 1], sizes = [16, 1], strides = [1, 1]} : vector<16x2xf32> to vector<16x1xf32>
    %10 = tpu.transpose %8, [1, 0] : vector<16x1xf32> -> vector<1x16xf32>
    %11 = vector.broadcast %9 : vector<16x1xf32> to vector<16x16xf32>
    %12 = vector.broadcast %10 : vector<1x16xf32> to vector<16x16xf32>
    %13 = arith.addf %11, %12 : vector<16x16xf32>
    %c0_10 = arith.constant 0 : index
    %c0_11 = arith.constant 0 : index
    %c0_12 = arith.constant 0 : index
    %14 = vector.load %arg4[%c0_10, %c0_11, %c0_12] : memref<3x16x16xf32, #tpu.memory_space<vmem>>, vector<1x16x16xf32>
    %15 = vector.shape_cast %14 : vector<1x16x16xf32> to vector<16x16xf32>
    %16 = arith.addf %13, %15 : vector<16x16xf32>
    %cst_13 = arith.constant 2.000000e-01 : f32
    %17 = vector.broadcast %cst_13 : f32 to vector<16x16xf32>
    %18 = arith.mulf %17, %16 : vector<16x16xf32>
    %19 = arith.maximumf %16, %18 : vector<16x16xf32>
    %cst_14 = arith.constant dense<0xFF800000> : vector<16xf32>
    %20 = vector.multi_reduction <maximumf>, %19, %cst_14 [1] : vector<16x16xf32> to vector<16xf32>
    %21 = vector.shape_cast %20 : vector<16xf32> to vector<16x1xf32>
    %22 = vector.broadcast %21 : vector<16x1xf32> to vector<16x16xf32>
    %23 = arith.subf %19, %22 : vector<16x16xf32>
    %24 = math.exp %23 : vector<16x16xf32>
    %cst_15 = arith.constant dense<0.000000e+00> : vector<16xf32>
    %25 = vector.multi_reduction <add>, %24, %cst_15 [1] : vector<16x16xf32> to vector<16xf32>
    %26 = vector.shape_cast %25 : vector<16xf32> to vector<16x1xf32>
    %27 = tpu.reciprocal %26 {approx = true} : vector<16x1xf32> -> vector<16x1xf32>
    %28 = vector.broadcast %27 : vector<16x1xf32> to vector<16x16xf32>
    %29 = arith.mulf %24, %28 : vector<16x16xf32>
    %cst_16 = arith.constant dense<0.000000e+00> : vector<16x32xf32>
    %30 = tpu.matmul %29, %4, %cst_16 {dimension_numbers = #tpu.dot_dimension_numbers<[1], [0], [0], [1], [0, 0, 1, 1], [], []>} : vector<16x16xf32>, vector<16x32xf32>, vector<16x32xf32> -> vector<16x32xf32>
    %31 = vector.extract_strided_slice %0 {offsets = [0, 0], sizes = [1, 32], strides = [1, 1]} : vector<7x32xf32> to vector<1x32xf32>
    %32 = vector.broadcast %31 : vector<1x32xf32> to vector<16x32xf32>
    %33 = arith.addf %30, %32 : vector<16x32xf32>
    %c1 = arith.constant 1 : index
    %c0_17 = arith.constant 0 : index
    %c0_18 = arith.constant 0 : index
    %34 = vector.load %arg1[%c1, %c0_17, %c0_18] : memref<3x32x32xf32, #tpu.memory_space<vmem>>, vector<1x32x32xf32>
    %35 = vector.shape_cast %34 : vector<1x32x32xf32> to vector<32x32xf32>
    %cst_19 = arith.constant dense<0.000000e+00> : vector<16x32xf32>
    %36 = tpu.matmul %33, %35, %cst_19 {dimension_numbers = #tpu.dot_dimension_numbers<[1], [0], [0], [1], [0, 0, 1, 1], [], []>} : vector<16x32xf32>, vector<32x32xf32>, vector<16x32xf32> -> vector<16x32xf32>
    %c1_20 = arith.constant 1 : index
    %c0_21 = arith.constant 0 : index
    %c0_22 = arith.constant 0 : index
    %37 = vector.load %arg2[%c1_20, %c0_21, %c0_22] : memref<3x32x2xf32, #tpu.memory_space<vmem>>, vector<1x32x2xf32>
    %38 = vector.shape_cast %37 : vector<1x32x2xf32> to vector<32x2xf32>
    %cst_23 = arith.constant dense<0.000000e+00> : vector<16x2xf32>
    %39 = tpu.matmul %36, %38, %cst_23 {dimension_numbers = #tpu.dot_dimension_numbers<[1], [0], [0], [1], [0, 0, 1, 1], [], []>} : vector<16x32xf32>, vector<32x2xf32>, vector<16x2xf32> -> vector<16x2xf32>
    %40 = vector.extract_strided_slice %39 {offsets = [0, 0], sizes = [16, 1], strides = [1, 1]} : vector<16x2xf32> to vector<16x1xf32>
    %41 = vector.extract_strided_slice %39 {offsets = [0, 1], sizes = [16, 1], strides = [1, 1]} : vector<16x2xf32> to vector<16x1xf32>
    %42 = tpu.transpose %40, [1, 0] : vector<16x1xf32> -> vector<1x16xf32>
    %43 = vector.broadcast %41 : vector<16x1xf32> to vector<16x16xf32>
    %44 = vector.broadcast %42 : vector<1x16xf32> to vector<16x16xf32>
    %45 = arith.addf %43, %44 : vector<16x16xf32>
    %c1_24 = arith.constant 1 : index
    %c0_25 = arith.constant 0 : index
    %c0_26 = arith.constant 0 : index
    %46 = vector.load %arg4[%c1_24, %c0_25, %c0_26] : memref<3x16x16xf32, #tpu.memory_space<vmem>>, vector<1x16x16xf32>
    %47 = vector.shape_cast %46 : vector<1x16x16xf32> to vector<16x16xf32>
    %48 = arith.addf %45, %47 : vector<16x16xf32>
    %cst_27 = arith.constant 2.000000e-01 : f32
    %49 = vector.broadcast %cst_27 : f32 to vector<16x16xf32>
    %50 = arith.mulf %49, %48 : vector<16x16xf32>
    %51 = arith.maximumf %48, %50 : vector<16x16xf32>
    %cst_28 = arith.constant dense<0xFF800000> : vector<16xf32>
    %52 = vector.multi_reduction <maximumf>, %51, %cst_28 [1] : vector<16x16xf32> to vector<16xf32>
    %53 = vector.shape_cast %52 : vector<16xf32> to vector<16x1xf32>
    %54 = vector.broadcast %53 : vector<16x1xf32> to vector<16x16xf32>
    %55 = arith.subf %51, %54 : vector<16x16xf32>
    %56 = math.exp %55 : vector<16x16xf32>
    %cst_29 = arith.constant dense<0.000000e+00> : vector<16xf32>
    %57 = vector.multi_reduction <add>, %56, %cst_29 [1] : vector<16x16xf32> to vector<16xf32>
    %58 = vector.shape_cast %57 : vector<16xf32> to vector<16x1xf32>
    %59 = tpu.reciprocal %58 {approx = true} : vector<16x1xf32> -> vector<16x1xf32>
    %60 = vector.broadcast %59 : vector<16x1xf32> to vector<16x16xf32>
    %61 = arith.mulf %56, %60 : vector<16x16xf32>
    %cst_30 = arith.constant dense<0.000000e+00> : vector<16x32xf32>
    %62 = tpu.matmul %61, %36, %cst_30 {dimension_numbers = #tpu.dot_dimension_numbers<[1], [0], [0], [1], [0, 0, 1, 1], [], []>} : vector<16x16xf32>, vector<16x32xf32>, vector<16x32xf32> -> vector<16x32xf32>
    %63 = vector.extract_strided_slice %0 {offsets = [1, 0], sizes = [1, 32], strides = [1, 1]} : vector<7x32xf32> to vector<1x32xf32>
    %64 = vector.broadcast %63 : vector<1x32xf32> to vector<16x32xf32>
    %65 = arith.addf %62, %64 : vector<16x32xf32>
    %c2 = arith.constant 2 : index
    %c0_31 = arith.constant 0 : index
    %c0_32 = arith.constant 0 : index
    %66 = vector.load %arg1[%c2, %c0_31, %c0_32] : memref<3x32x32xf32, #tpu.memory_space<vmem>>, vector<1x32x32xf32>
    %67 = vector.shape_cast %66 : vector<1x32x32xf32> to vector<32x32xf32>
    %cst_33 = arith.constant dense<0.000000e+00> : vector<16x32xf32>
    %68 = tpu.matmul %65, %67, %cst_33 {dimension_numbers = #tpu.dot_dimension_numbers<[1], [0], [0], [1], [0, 0, 1, 1], [], []>} : vector<16x32xf32>, vector<32x32xf32>, vector<16x32xf32> -> vector<16x32xf32>
    %c2_34 = arith.constant 2 : index
    %c0_35 = arith.constant 0 : index
    %c0_36 = arith.constant 0 : index
    %69 = vector.load %arg2[%c2_34, %c0_35, %c0_36] : memref<3x32x2xf32, #tpu.memory_space<vmem>>, vector<1x32x2xf32>
    %70 = vector.shape_cast %69 : vector<1x32x2xf32> to vector<32x2xf32>
    %cst_37 = arith.constant dense<0.000000e+00> : vector<16x2xf32>
    %71 = tpu.matmul %68, %70, %cst_37 {dimension_numbers = #tpu.dot_dimension_numbers<[1], [0], [0], [1], [0, 0, 1, 1], [], []>} : vector<16x32xf32>, vector<32x2xf32>, vector<16x2xf32> -> vector<16x2xf32>
    %72 = vector.extract_strided_slice %71 {offsets = [0, 0], sizes = [16, 1], strides = [1, 1]} : vector<16x2xf32> to vector<16x1xf32>
    %73 = vector.extract_strided_slice %71 {offsets = [0, 1], sizes = [16, 1], strides = [1, 1]} : vector<16x2xf32> to vector<16x1xf32>
    %74 = tpu.transpose %72, [1, 0] : vector<16x1xf32> -> vector<1x16xf32>
    %75 = vector.broadcast %73 : vector<16x1xf32> to vector<16x16xf32>
    %76 = vector.broadcast %74 : vector<1x16xf32> to vector<16x16xf32>
    %77 = arith.addf %75, %76 : vector<16x16xf32>
    %c2_38 = arith.constant 2 : index
    %c0_39 = arith.constant 0 : index
    %c0_40 = arith.constant 0 : index
    %78 = vector.load %arg4[%c2_38, %c0_39, %c0_40] : memref<3x16x16xf32, #tpu.memory_space<vmem>>, vector<1x16x16xf32>
    %79 = vector.shape_cast %78 : vector<1x16x16xf32> to vector<16x16xf32>
    %80 = arith.addf %77, %79 : vector<16x16xf32>
    %cst_41 = arith.constant 2.000000e-01 : f32
    %81 = vector.broadcast %cst_41 : f32 to vector<16x16xf32>
    %82 = arith.mulf %81, %80 : vector<16x16xf32>
    %83 = arith.maximumf %80, %82 : vector<16x16xf32>
    %cst_42 = arith.constant dense<0xFF800000> : vector<16xf32>
    %84 = vector.multi_reduction <maximumf>, %83, %cst_42 [1] : vector<16x16xf32> to vector<16xf32>
    %85 = vector.shape_cast %84 : vector<16xf32> to vector<16x1xf32>
    %86 = vector.broadcast %85 : vector<16x1xf32> to vector<16x16xf32>
    %87 = arith.subf %83, %86 : vector<16x16xf32>
    %88 = math.exp %87 : vector<16x16xf32>
    %cst_43 = arith.constant dense<0.000000e+00> : vector<16xf32>
    %89 = vector.multi_reduction <add>, %88, %cst_43 [1] : vector<16x16xf32> to vector<16xf32>
    %90 = vector.shape_cast %89 : vector<16xf32> to vector<16x1xf32>
    %91 = tpu.reciprocal %90 {approx = true} : vector<16x1xf32> -> vector<16x1xf32>
    %92 = vector.broadcast %91 : vector<16x1xf32> to vector<16x16xf32>
    %93 = arith.mulf %88, %92 : vector<16x16xf32>
    %cst_44 = arith.constant dense<0.000000e+00> : vector<16x32xf32>
    %94 = tpu.matmul %93, %68, %cst_44 {dimension_numbers = #tpu.dot_dimension_numbers<[1], [0], [0], [1], [0, 0, 1, 1], [], []>} : vector<16x16xf32>, vector<16x32xf32>, vector<16x32xf32> -> vector<16x32xf32>
    %95 = vector.extract_strided_slice %0 {offsets = [2, 0], sizes = [1, 32], strides = [1, 1]} : vector<7x32xf32> to vector<1x32xf32>
    %96 = vector.broadcast %95 : vector<1x32xf32> to vector<16x32xf32>
    %97 = arith.addf %94, %96 : vector<16x32xf32>
    %98 = vector.extract_strided_slice %0 {offsets = [3, 0], sizes = [1, 32], strides = [1, 1]} : vector<7x32xf32> to vector<1x32xf32>
    %99 = vector.broadcast %98 : vector<1x32xf32> to vector<16x32xf32>
    %100 = arith.mulf %33, %99 : vector<16x32xf32>
    %101 = vector.extract_strided_slice %0 {offsets = [4, 0], sizes = [1, 32], strides = [1, 1]} : vector<7x32xf32> to vector<1x32xf32>
    %102 = vector.broadcast %101 : vector<1x32xf32> to vector<16x32xf32>
    %103 = arith.mulf %65, %102 : vector<16x32xf32>
    %104 = arith.addf %100, %103 : vector<16x32xf32>
    %105 = vector.extract_strided_slice %0 {offsets = [5, 0], sizes = [1, 32], strides = [1, 1]} : vector<7x32xf32> to vector<1x32xf32>
    %106 = vector.broadcast %105 : vector<1x32xf32> to vector<16x32xf32>
    %107 = arith.mulf %97, %106 : vector<16x32xf32>
    %108 = arith.addf %104, %107 : vector<16x32xf32>
    %c0_45 = arith.constant 0 : index
    %c0_46 = arith.constant 0 : index
    %109 = vector.load %arg5[%c0_45, %c0_46] : memref<2x16xf32, #tpu.memory_space<vmem>>, vector<2x16xf32>
    %cst_47 = arith.constant dense<0.000000e+00> : vector<2x32xf32>
    %110 = tpu.matmul %109, %108, %cst_47 {dimension_numbers = #tpu.dot_dimension_numbers<[1], [0], [0], [1], [0, 0, 1, 1], [], []>} : vector<2x16xf32>, vector<16x32xf32>, vector<2x32xf32> -> vector<2x32xf32>
    %cst_48 = arith.constant dense<0.000000e+00> : vector<2xf32>
    %111 = vector.multi_reduction <add>, %110, %cst_48 [1] : vector<2x32xf32> to vector<2xf32>
    %112 = vector.shape_cast %111 : vector<2xf32> to vector<2x1xf32>
    %113 = vector.extract_strided_slice %0 {offsets = [6, 0], sizes = [1, 1], strides = [1, 1]} : vector<7x32xf32> to vector<1x1xf32>
    %114 = vector.broadcast %113 : vector<1x1xf32> to vector<2x1xf32>
    %115 = arith.addf %112, %114 : vector<2x1xf32>
    %c0_49 = arith.constant 0 : index
    %c0_50 = arith.constant 0 : index
    %116 = vector.load %arg6[%c0_49, %c0_50] : memref<2x1xf32, #tpu.memory_space<vmem>>, vector<2x1xf32>
    tpu.vector_store %arg6[%c0_49, %c0_50], %115 {strides = array<i32>} : memref<2x1xf32, #tpu.memory_space<vmem>>, vector<2x1xf32>,
    return
  }
}

</mosaic_0001>

<llo_original>
// kernel: gat_model_forward.1
$region0: #{gat_model_forward.1}
  #allocation0 [shape = 'u32[]', space=smem, size = 0x4, offset = 0x4, fixed_abs, tag = 'smem constant byte address 0x4 - core index']
  #allocation1 [shape = 'u32[144,128]{1,0:T(1,128)}', space=vmem, size = 0x12000, scoped, tag = 'internal scratch']
  %s0 = inlined_call_operand.vmem [shape: f32[16,32], index: 0, kind: input, shape index: {}]
  %s1 = inlined_call_operand.vmem [shape: f32[3,32,32], index: 1, kind: input, shape index: {}]
  %s2 = inlined_call_operand.vmem [shape: f32[3,32,2], index: 2, kind: input, shape index: {}]
  %s3 = inlined_call_operand.vmem [shape: f32[7,32], index: 3, kind: input, shape index: {}]
  %s4 = inlined_call_operand.vmem [shape: f32[3,16,16], index: 4, kind: input, shape index: {}]
  %s5 = inlined_call_operand.vmem [shape: f32[2,16], index: 5, kind: input, shape index: {}]
  %s6 = inlined_call_operand.vmem [shape: f32[2,1], index: 6, kind: output, shape index: {}]
  %s7 = sld [smem:[#allocation0]]
  $region34: #{gat_model_forward.1} parent=0
    _
  %s9 = ssub.s32 1, %s7
  %s10 = scalar_select 0, %s9, %s7
  // Predicated region
  $region2: #{gat_model_forward.1} parent=0 // pred_check
    _
  $region3: #{gat_model_forward.1} parent=0 // pred_check_branch
    %12 = sbr.rel (0) target = $region5
  $region4: #{gat_model_forward.1} parent=0 // pred_region
    _
  $region5: #{gat_model_forward.1} parent=0 // pred_fallthru
    _
  // Predicated region
  $region6: #{gat_model_forward.1} parent=0 // pred_check
    _
  $region7: #{gat_model_forward.1} parent=0 // pred_check_branch
    %14 = sbr.rel (0) target = $region9
  $region8: #{gat_model_forward.1} parent=0 // pred_region
    _
  $region9: #{gat_model_forward.1} parent=0 // pred_fallthru
    _
  // Predicated region
  $region10: #{gat_model_forward.1} parent=0 // pred_check
    _
  $region11: #{gat_model_forward.1} parent=0 // pred_check_branch
    %16 = sbr.rel (0) target = $region13
  $region12: #{gat_model_forward.1} parent=0 // pred_region
    _
  $region13: #{gat_model_forward.1} parent=0 // pred_fallthru
    _
  // Predicated region
  $region14: #{gat_model_forward.1} parent=0 // pred_check
    _
  $region15: #{gat_model_forward.1} parent=0 // pred_check_branch
    %18 = sbr.rel (0) target = $region17
  $region16: #{gat_model_forward.1} parent=0 // pred_region
    _
  $region17: #{gat_model_forward.1} parent=0 // pred_fallthru
    _
  // Predicated region
  $region18: #{gat_model_forward.1} parent=0 // pred_check
    _
  $region19: #{gat_model_forward.1} parent=0 // pred_check_branch
    %20 = sbr.rel (0) target = $region21
  $region20: #{gat_model_forward.1} parent=0 // pred_region
    _
  $region21: #{gat_model_forward.1} parent=0 // pred_fallthru
    _
  // Predicated region
  $region22: #{gat_model_forward.1} parent=0 // pred_check
    _
  $region23: #{gat_model_forward.1} parent=0 // pred_check_branch
    %22 = sbr.rel (0) target = $region25
  $region24: #{gat_model_forward.1} parent=0 // pred_region
    _
  $region25: #{gat_model_forward.1} parent=0 // pred_fallthru
    _
  %v23 = vld [vmem:[%s3] sm:$0x7f]
  %v24 = vld [vmem:[%s0] sm:$0xff]
  %v25 = vld [vmem:[%s0 + $0x8] sm:$0xff]
  %v26 = vld [vmem:[%s1] sm:$0xff]
  %v27 = vld [vmem:[%s1 + $0x8] sm:$0xff]
  %v28 = vld [vmem:[%s1 + $0x10] sm:$0xff]
  %v29 = vld [vmem:[%s1 + $0x18] sm:$0xff]
  %vm30 = vcmask 261120
  %v32 = vsel %vm30, %v24, 0
  %v35 = vsel %vm30, %v25, 0
  %37 = vmatprep.subr.mxu0 0.0
  %38 = vmatpush1.msra.mxu0 0.0
  %39 = vmatprep.subr.mxu0 0.0
  %40 = vmatpush1.msra.mxu0 0.0
  %41 = vmatprep.subr.mxu0 0.0
  %42 = vmatpush1.msra.mxu0 0.0
  %43 = vmatprep.subr.mxu0 0.0
  %44 = vmatpush1.msra.mxu0 0.0
  %45 = vmatprep.subr.mxu0 0.0
  %46 = vmatpush1.msra.mxu0 0.0
  %47 = vmatprep.subr.mxu0 0.0
  %48 = vmatpush1.msra.mxu0 0.0
  %49 = vmatprep.subr.mxu0 0.0
  %50 = vmatpush1.msra.mxu0 0.0
  %51 = vmatprep.subr.mxu0 0.0
  %52 = vmatpush1.msra.mxu0 0.0
  %53 = vmatprep.subr.mxu0 0.0
  %54 = vmatpush1.msra.mxu0 0.0
  %55 = vmatprep.subr.mxu0 0.0
  %56 = vmatpush1.msra.mxu0 0.0
  %57 = vmatprep.subr.mxu0 0.0
  %58 = vmatpush1.msra.mxu0 0.0
  %59 = vmatprep.subr.mxu0 0.0
  %60 = vmatpush1.msra.mxu0 0.0
  %61 = vmatprep.subr.mxu0 0.0
  %62 = vmatpush1.msra.mxu0 %v29
  %63 = vmatprep.subr.mxu0 0.0
  %64 = vmatpush1.msra.mxu0 %v28
  %65 = vmatprep.subr.mxu0 0.0
  %66 = vmatpush1.msra.mxu0 %v27
  %67 = vmatprep.subr.mxu0 0.0
  %68 = vmatpush1.msra.mxu0 %v26
  %69 = vmatprep.subr.mxu0 0.0
  %70 = vmatpush2.msra.mxu0 0.0
  %71 = vmatprep.subr.mxu0 0.0
  %72 = vmatpush2.msra.mxu0 0.0
  %73 = vmatprep.subr.mxu0 0.0
  %74 = vmatpush2.msra.mxu0 0.0
  %75 = vmatprep.subr.mxu0 0.0
  %76 = vmatpush2.msra.mxu0 0.0
  %77 = vmatprep.subr.mxu0 0.0
  %78 = vmatpush2.msra.mxu0 0.0
  %79 = vmatprep.subr.mxu0 0.0
  %80 = vmatpush2.msra.mxu0 0.0
  %81 = vmatprep.subr.mxu0 0.0
  %82 = vmatpush2.msra.mxu0 0.0
  %83 = vmatprep.subr.mxu0 0.0
  %84 = vmatpush2.msra.mxu0 0.0
  %85 = vmatprep.subr.mxu0 0.0
  %86 = vmatpush2.msra.mxu0 0.0
  %87 = vmatprep.subr.mxu0 0.0
  %88 = vmatpush2.msra.mxu0 0.0
  %89 = vmatprep.subr.mxu0 0.0
  %90 = vmatpush2.msra.mxu0 0.0
  %91 = vmatprep.subr.mxu0 0.0
  %92 = vmatpush2.msra.mxu0 0.0
  %93 = vmatprep.subr.mxu0 0.0
  %94 = vmatpush2.msra.mxu0 0.0
  %95 = vmatprep.subr.mxu0 0.0
  %96 = vmatpush2.msra.mxu0 0.0
  %97 = vmatprep.subr.mxu0 0.0
  %98 = vmatpush2.msra.mxu0 0.0
  %99 = vmatprep.subr.mxu0 0.0
  %100 = vmatpush2.msra.mxu0 0.0
  %101 = vmatprep.mubr.f32.mxu0 0.0
  %102 = vmatmul.mubr.f32.gmra.mxu0 %v32
  %v103 = vpop.f32.mrf.mxu0
  %v104 = vadd.f32 0.0, %v103
  %v105 = vpop.f32.mrf.mxu0
  %106 = vmatprep.mubr.f32.mxu0 0.0
  %107 = vmatmul.mubr.f32.gmra.mxu0 %v35
  %v108 = vpop.f32.mrf.mxu0
  %v109 = vadd.f32 0.0, %v108
  %v110 = vpop.f32.mrf.mxu0
  %111 = vdwg.mxu0
  %v112 = vld [vmem:[%s2] sm:$0xff]
  %v113 = vld [vmem:[%s2 + $0x8] sm:$0xff]
  %v114 = vld [vmem:[%s2 + $0x10] sm:$0xff]
  %v115 = vld [vmem:[%s2 + $0x18] sm:$0xff]
  %v117 = vsel %vm30, %v104, 0
  %v120 = vsel %vm30, %v109, 0
  %122 = vmatprep.subr.mxu0 0.0
  %123 = vmatpush1.msra.mxu0 0.0
  %124 = vmatprep.subr.mxu0 0.0
  %125 = vmatpush1.msra.mxu0 0.0
  %126 = vmatprep.subr.mxu0 0.0
  %127 = vmatpush1.msra.mxu0 0.0
  %128 = vmatprep.subr.mxu0 0.0
  %129 = vmatpush1.msra.mxu0 0.0
  %130 = vmatprep.subr.mxu0 0.0
  %131 = vmatpush1.msra.mxu0 0.0
  %132 = vmatprep.subr.mxu0 0.0
  %133 = vmatpush1.msra.mxu0 0.0
  %134 = vmatprep.subr.mxu0 0.0
  %135 = vmatpush1.msra.mxu0 0.0
  %136 = vmatprep.subr.mxu0 0.0
  %137 = vmatpush1.msra.mxu0 0.0
  %138 = vmatprep.subr.mxu0 0.0
  %139 = vmatpush1.msra.mxu0 0.0
  %140 = vmatprep.subr.mxu0 0.0
  %141 = vmatpush1.msra.mxu0 0.0
  %142 = vmatprep.subr.mxu0 0.0
  %143 = vmatpush1.msra.mxu0 0.0
  %144 = vmatprep.subr.mxu0 0.0
  %145 = vmatpush1.msra.mxu0 0.0
  %146 = vmatprep.subr.mxu0 0.0
  %147 = vmatpush1.msra.mxu0 %v115
  %148 = vmatprep.subr.mxu0 0.0
  %149 = vmatpush1.msra.mxu0 %v114
  %150 = vmatprep.subr.mxu0 0.0
  %151 = vmatpush1.msra.mxu0 %v113
  %152 = vmatprep.subr.mxu0 0.0
  %153 = vmatpush1.msra.mxu0 %v112
  %154 = vmatprep.subr.mxu0 0.0
  %155 = vmatpush2.msra.mxu0 0.0
  %156 = vmatprep.subr.mxu0 0.0
  %157 = vmatpush2.msra.mxu0 0.0
  %158 = vmatprep.subr.mxu0 0.0
  %159 = vmatpush2.msra.mxu0 0.0
  %160 = vmatprep.subr.mxu0 0.0
  %161 = vmatpush2.msra.mxu0 0.0
  %162 = vmatprep.subr.mxu0 0.0
  %163 = vmatpush2.msra.mxu0 0.0
  %164 = vmatprep.subr.mxu0 0.0
  %165 = vmatpush2.msra.mxu0 0.0
  %166 = vmatprep.subr.mxu0 0.0
  %167 = vmatpush2.msra.mxu0 0.0
  %168 = vmatprep.subr.mxu0 0.0
  %169 = vmatpush2.msra.mxu0 0.0
  %170 = vmatprep.subr.mxu0 0.0
  %171 = vmatpush2.msra.mxu0 0.0
  %172 = vmatprep.subr.mxu0 0.0
  %173 = vmatpush2.msra.mxu0 0.0
  %174 = vmatprep.subr.mxu0 0.0
  %175 = vmatpush2.msra.mxu0 0.0
  %176 = vmatprep.subr.mxu0 0.0
  %177 = vmatpush2.msra.mxu0 0.0
  %178 = vmatprep.subr.mxu0 0.0
  %179 = vmatpush2.msra.mxu0 0.0
  %180 = vmatprep.subr.mxu0 0.0
  %181 = vmatpush2.msra.mxu0 0.0
  %182 = vmatprep.subr.mxu0 0.0
  %183 = vmatpush2.msra.mxu0 0.0
  %184 = vmatprep.subr.mxu0 0.0
  %185 = vmatpush2.msra.mxu0 0.0
  %186 = vmatprep.mubr.f32.mxu0 0.0
  %187 = vmatmul.mubr.f32.gmra.mxu0 %v117
  %v188 = vpop.f32.mrf.mxu0
  %v189 = vadd.f32 0.0, %v188
  %v190 = vpop.f32.mrf.mxu0
  %191 = vmatprep.mubr.f32.mxu0 0.0
  %192 = vmatmul.mubr.f32.gmra.mxu0 %v120
  %v193 = vpop.f32.mrf.mxu0
  %v194 = vadd.f32 0.0, %v193
  %v195 = vpop.f32.mrf.mxu0
  %196 = vdwg.mxu0
  %197 = vxpose.xlu0.b32.start [1/16] %v189, 128
  %198 = vxpose.xlu0.b32.cont [2/16] %v194, 128
  %199 = vxpose.xlu0.b32.cont [3/16] 0.0, 128
  %200 = vxpose.xlu0.b32.cont [4/16] 0.0, 128
  %201 = vxpose.xlu0.b32.cont [5/16] 0.0, 128
  %202 = vxpose.xlu0.b32.cont [6/16] 0.0, 128
  %203 = vxpose.xlu0.b32.cont [7/16] 0.0, 128
  %204 = vxpose.xlu0.b32.cont [8/16] 0.0, 128
  %205 = vxpose.xlu0.b32.cont [9/16] 0.0, 128
  %206 = vxpose.xlu0.b32.cont [10/16] 0.0, 128
  %207 = vxpose.xlu0.b32.cont [11/16] 0.0, 128
  %208 = vxpose.xlu0.b32.cont [12/16] 0.0, 128
  %209 = vxpose.xlu0.b32.cont [13/16] 0.0, 128
  %210 = vxpose.xlu0.b32.cont [14/16] 0.0, 128
  %211 = vxpose.xlu0.b32.cont [15/16] 0.0, 128
  %212 = vxpose.xlu0.b32.end [16/16] 0.0, 128
  %v213 = vpop.trf.xlu0
  %v214 = vpop.trf.xlu0
  %v215 = vpop.trf.xlu0
  %v216 = vpop.trf.xlu0
  %v217 = vpop.trf.xlu0
  %v218 = vpop.trf.xlu0
  %v219 = vpop.trf.xlu0
  %v220 = vpop.trf.xlu0
  %v221 = vpop.trf.xlu0
  %v222 = vpop.trf.xlu0
  %v223 = vpop.trf.xlu0
  %v224 = vpop.trf.xlu0
  %v225 = vpop.trf.xlu0
  %v226 = vpop.trf.xlu0
  %v227 = vpop.trf.xlu0
  %v228 = vpop.trf.xlu0
  %230 = vset.pattern.permute.xlu0 1
  %231 = vperm.xlu0 %230, %v189
  %v232 = vpop.permute.xlu0 %231
  %235 = vset.pattern.permute.xlu0 1
  %236 = vperm.xlu0 %235, %v194
  %v237 = vpop.permute.xlu0 %236
  %v239 = vlaneseq
  %v240 = vshrl.u32 %v239, 7
  %v241 = vsub.s32 0, %v240
  %v242 = vrot.slane %v213, %v241
  %v243 = vadd.f32 %v232, %v242
  %v244 = vadd.f32 %v237, %v242
  %v245 = vld [vmem:[%s4] sm:$0xff]
  %v246 = vld [vmem:[%s4 + $0x8] sm:$0xff]
  %v247 = vadd.f32 %v243, %v245
  %v248 = vadd.f32 %v244, %v246
  %v249 = vmul.f32 %v247, 0.2
  %v250 = vmul.f32 %v248, 0.2
  %v251 = vmax.f32 %v247, %v249
  %v252 = vmax.f32 %v248, %v250
  %vm253 = vcmask 130048
  %v254 = vsel %vm253, %v251, -inf
  %255 = vmax.xlane.f32.xlu0 %v254
  %v256 = vpop.xlane.xlu0 %255
  %v257 = vsel %vm253, %v252, -inf
  %258 = vmax.xlane.f32.xlu0 %v257
  %v259 = vpop.xlane.xlu0 %258
  %v260 = vsub.f32 %v251, %v256
  %v261 = vsub.f32 %v252, %v259
  %v262 = vmul.f32 %v260, 1.442695
  %v263 = vpow.pop %v262
  %v264 = vmul.f32 %v261, 1.442695
  %v265 = vpow.pop %v264
  %v266 = vsel %vm253, %v263, 0.0
  %267 = vadd.xlane.f32.xlu0 %v266
  %v268 = vpop.xlane.xlu0 %267
  %v269 = vsel %vm253, %v265, 0.0
  %270 = vadd.xlane.f32.xlu0 %v269
  %v271 = vpop.xlane.xlu0 %270
  %v272 = vrcp.pop %v268
  %v273 = vrcp.pop %v271
  %v274 = vmul.f32 %v263, %v272
  %v275 = vmul.f32 %v265, %v273
  %v276 = vlaneseq
  %v277 = vshrl.u32 %v276, 7
  %v278 = vsub.s32 0, %v277
  %v279 = vrot.slane %v23, %v278
  %v281 = vsel %vm253, %v274, 0
  %v284 = vsel %vm253, %v275, 0
  %286 = vmatprep.subr.mxu0 0.0
  %287 = vmatpush1.msra.mxu0 0.0
  %288 = vmatprep.subr.mxu0 0.0
  %289 = vmatpush1.msra.mxu0 0.0
  %290 = vmatprep.subr.mxu0 0.0
  %291 = vmatpush1.msra.mxu0 0.0
  %292 = vmatprep.subr.mxu0 0.0
  %293 = vmatpush1.msra.mxu0 0.0
  %294 = vmatprep.subr.mxu0 0.0
  %295 = vmatpush1.msra.mxu0 0.0
  %296 = vmatprep.subr.mxu0 0.0
  %297 = vmatpush1.msra.mxu0 0.0
  %298 = vmatprep.subr.mxu0 0.0
  %299 = vmatpush1.msra.mxu0 0.0
  %300 = vmatprep.subr.mxu0 0.0
  %301 = vmatpush1.msra.mxu0 0.0
  %302 = vmatprep.subr.mxu0 0.0
  %303 = vmatpush1.msra.mxu0 0.0
  %304 = vmatprep.subr.mxu0 0.0
  %305 = vmatpush1.msra.mxu0 0.0
  %306 = vmatprep.subr.mxu0 0.0
  %307 = vmatpush1.msra.mxu0 0.0
  %308 = vmatprep.subr.mxu0 0.0
  %309 = vmatpush1.msra.mxu0 0.0
  %310 = vmatprep.subr.mxu0 0.0
  %311 = vmatpush1.msra.mxu0 0.0
  %312 = vmatprep.subr.mxu0 0.0
  %313 = vmatpush1.msra.mxu0 0.0
  %314 = vmatprep.subr.mxu0 0.0
  %315 = vmatpush1.msra.mxu0 %v109
  %316 = vmatprep.subr.mxu0 0.0
  %317 = vmatpush1.msra.mxu0 %v104
  %318 = vmatprep.subr.mxu0 0.0
  %319 = vmatpush2.msra.mxu0 0.0
  %320 = vmatprep.subr.mxu0 0.0
  %321 = vmatpush2.msra.mxu0 0.0
  %322 = vmatprep.subr.mxu0 0.0
  %323 = vmatpush2.msra.mxu0 0.0
  %324 = vmatprep.subr.mxu0 0.0
  %325 = vmatpush2.msra.mxu0 0.0
  %326 = vmatprep.subr.mxu0 0.0
  %327 = vmatpush2.msra.mxu0 0.0
  %328 = vmatprep.subr.mxu0 0.0
  %329 = vmatpush2.msra.mxu0 0.0
  %330 = vmatprep.subr.mxu0 0.0
  %331 = vmatpush2.msra.mxu0 0.0
  %332 = vmatprep.subr.mxu0 0.0
  %333 = vmatpush2.msra.mxu0 0.0
  %334 = vmatprep.subr.mxu0 0.0
  %335 = vmatpush2.msra.mxu0 0.0
  %336 = vmatprep.subr.mxu0 0.0
  %337 = vmatpush2.msra.mxu0 0.0
  %338 = vmatprep.subr.mxu0 0.0
  %339 = vmatpush2.msra.mxu0 0.0
  %340 = vmatprep.subr.mxu0 0.0
  %341 = vmatpush2.msra.mxu0 0.0
  %342 = vmatprep.subr.mxu0 0.0
  %343 = vmatpush2.msra.mxu0 0.0
  %344 = vmatprep.subr.mxu0 0.0
  %345 = vmatpush2.msra.mxu0 0.0
  %346 = vmatprep.subr.mxu0 0.0
  %347 = vmatpush2.msra.mxu0 0.0
  %348 = vmatprep.subr.mxu0 0.0
  %349 = vmatpush2.msra.mxu0 0.0
  %350 = vmatprep.mubr.f32.mxu0 0.0
  %351 = vmatmul.mubr.f32.gmra.mxu0 %v281
  %v352 = vpop.f32.mrf.mxu0
  %v353 = vadd.f32 %v279, %v352
  %v354 = vpop.f32.mrf.mxu0
  %355 = vmatprep.mubr.f32.mxu0 0.0
  %356 = vmatmul.mubr.f32.gmra.mxu0 %v284
  %v357 = vpop.f32.mrf.mxu0
  %v358 = vadd.f32 %v279, %v357
  %v359 = vpop.f32.mrf.mxu0
  %360 = vdwg.mxu0
  %s361 = scalar_lea.vmem %s1, 32
  %v362 = vld [vmem:[%s361] sm:$0xff]
  %v363 = vld [vmem:[%s361 + $0x8] sm:$0xff]
  %v364 = vld [vmem:[%s361 + $0x10] sm:$0xff]
  %v365 = vld [vmem:[%s361 + $0x18] sm:$0xff]
  %v367 = vsel %vm30, %v353, 0
  %v370 = vsel %vm30, %v358, 0
  %372 = vmatprep.subr.mxu0 0.0
  %373 = vmatpush1.msra.mxu0 0.0
  %374 = vmatprep.subr.mxu0 0.0
  %375 = vmatpush1.msra.mxu0 0.0
  %376 = vmatprep.subr.mxu0 0.0
  %377 = vmatpush1.msra.mxu0 0.0
  %378 = vmatprep.subr.mxu0 0.0
  %379 = vmatpush1.msra.mxu0 0.0
  %380 = vmatprep.subr.mxu0 0.0
  %381 = vmatpush1.msra.mxu0 0.0
  %382 = vmatprep.subr.mxu0 0.0
  %383 = vmatpush1.msra.mxu0 0.0
  %384 = vmatprep.subr.mxu0 0.0
  %385 = vmatpush1.msra.mxu0 0.0
  %386 = vmatprep.subr.mxu0 0.0
  %387 = vmatpush1.msra.mxu0 0.0
  %388 = vmatprep.subr.mxu0 0.0
  %389 = vmatpush1.msra.mxu0 0.0
  %390 = vmatprep.subr.mxu0 0.0
  %391 = vmatpush1.msra.mxu0 0.0
  %392 = vmatprep.subr.mxu0 0.0
  %393 = vmatpush1.msra.mxu0 0.0
  %394 = vmatprep.subr.mxu0 0.0
  %395 = vmatpush1.msra.mxu0 0.0
  %396 = vmatprep.subr.mxu0 0.0
  %397 = vmatpush1.msra.mxu0 %v365
  %398 = vmatprep.subr.mxu0 0.0
  %399 = vmatpush1.msra.mxu0 %v364
  %400 = vmatprep.subr.mxu0 0.0
  %401 = vmatpush1.msra.mxu0 %v363
  %402 = vmatprep.subr.mxu0 0.0
  %403 = vmatpush1.msra.mxu0 %v362
  %404 = vmatprep.subr.mxu0 0.0
  %405 = vmatpush2.msra.mxu0 0.0
  %406 = vmatprep.subr.mxu0 0.0
  %407 = vmatpush2.msra.mxu0 0.0
  %408 = vmatprep.subr.mxu0 0.0
  %409 = vmatpush2.msra.mxu0 0.0
  %410 = vmatprep.subr.mxu0 0.0
  %411 = vmatpush2.msra.mxu0 0.0
  %412 = vmatprep.subr.mxu0 0.0
  %413 = vmatpush2.msra.mxu0 0.0
  %414 = vmatprep.subr.mxu0 0.0
  %415 = vmatpush2.msra.mxu0 0.0
  %416 = vmatprep.subr.mxu0 0.0
  %417 = vmatpush2.msra.mxu0 0.0
  %418 = vmatprep.subr.mxu0 0.0
  %419 = vmatpush2.msra.mxu0 0.0
  %420 = vmatprep.subr.mxu0 0.0
  %421 = vmatpush2.msra.mxu0 0.0
  %422 = vmatprep.subr.mxu0 0.0
  %423 = vmatpush2.msra.mxu0 0.0
  %424 = vmatprep.subr.mxu0 0.0
  %425 = vmatpush2.msra.mxu0 0.0
  %426 = vmatprep.subr.mxu0 0.0
  %427 = vmatpush2.msra.mxu0 0.0
  %428 = vmatprep.subr.mxu0 0.0
  %429 = vmatpush2.msra.mxu0 0.0
  %430 = vmatprep.subr.mxu0 0.0
  %431 = vmatpush2.msra.mxu0 0.0
  %432 = vmatprep.subr.mxu0 0.0
  %433 = vmatpush2.msra.mxu0 0.0
  %434 = vmatprep.subr.mxu0 0.0
  %435 = vmatpush2.msra.mxu0 0.0
  %436 = vmatprep.mubr.f32.mxu0 0.0
  %437 = vmatmul.mubr.f32.gmra.mxu0 %v367
  %v438 = vpop.f32.mrf.mxu0
  %v439 = vadd.f32 0.0, %v438
  %v440 = vpop.f32.mrf.mxu0
  %441 = vmatprep.mubr.f32.mxu0 0.0
  %442 = vmatmul.mubr.f32.gmra.mxu0 %v370
  %v443 = vpop.f32.mrf.mxu0
  %v444 = vadd.f32 0.0, %v443
  %v445 = vpop.f32.mrf.mxu0
  %446 = vdwg.mxu0
  %s447 = scalar_lea.vmem %s2, 32
  %v448 = vld [vmem:[%s447] sm:$0xff]
  %v449 = vld [vmem:[%s447 + $0x8] sm:$0xff]
  %v450 = vld [vmem:[%s447 + $0x10] sm:$0xff]
  %v451 = vld [vmem:[%s447 + $0x18] sm:$0xff]
  %v453 = vsel %vm30, %v439, 0
  %v456 = vsel %vm30, %v444, 0
  %458 = vmatprep.subr.mxu0 0.0
  %459 = vmatpush1.msra.mxu0 0.0
  %460 = vmatprep.subr.mxu0 0.0
  %461 = vmatpush1.msra.mxu0 0.0
  %462 = vmatprep.subr.mxu0 0.0
  %463 = vmatpush1.msra.mxu0 0.0
  %464 = vmatprep.subr.mxu0 0.0
  %465 = vmatpush1.msra.mxu0 0.0
  %466 = vmatprep.subr.mxu0 0.0
  %467 = vmatpush1.msra.mxu0 0.0
  %468 = vmatprep.subr.mxu0 0.0
  %469 = vmatpush1.msra.mxu0 0.0
  %470 = vmatprep.subr.mxu0 0.0
  %471 = vmatpush1.msra.mxu0 0.0
  %472 = vmatprep.subr.mxu0 0.0
  %473 = vmatpush1.msra.mxu0 0.0
  %474 = vmatprep.subr.mxu0 0.0
  %475 = vmatpush1.msra.mxu0 0.0
  %476 = vmatprep.subr.mxu0 0.0
  %477 = vmatpush1.msra.mxu0 0.0
  %478 = vmatprep.subr.mxu0 0.0
  %479 = vmatpush1.msra.mxu0 0.0
  %480 = vmatprep.subr.mxu0 0.0
  %481 = vmatpush1.msra.mxu0 0.0
  %482 = vmatprep.subr.mxu0 0.0
  %483 = vmatpush1.msra.mxu0 %v451
  %484 = vmatprep.subr.mxu0 0.0
  %485 = vmatpush1.msra.mxu0 %v450
  %486 = vmatprep.subr.mxu0 0.0
  %487 = vmatpush1.msra.mxu0 %v449
  %488 = vmatprep.subr.mxu0 0.0
  %489 = vmatpush1.msra.mxu0 %v448
  %490 = vmatprep.subr.mxu0 0.0
  %491 = vmatpush2.msra.mxu0 0.0
  %492 = vmatprep.subr.mxu0 0.0
  %493 = vmatpush2.msra.mxu0 0.0
  %494 = vmatprep.subr.mxu0 0.0
  %495 = vmatpush2.msra.mxu0 0.0
  %496 = vmatprep.subr.mxu0 0.0
  %497 = vmatpush2.msra.mxu0 0.0
  %498 = vmatprep.subr.mxu0 0.0
  %499 = vmatpush2.msra.mxu0 0.0
  %500 = vmatprep.subr.mxu0 0.0
  %501 = vmatpush2.msra.mxu0 0.0
  %502 = vmatprep.subr.mxu0 0.0
  %503 = vmatpush2.msra.mxu0 0.0
  %504 = vmatprep.subr.mxu0 0.0
  %505 = vmatpush2.msra.mxu0 0.0
  %506 = vmatprep.subr.mxu0 0.0
  %507 = vmatpush2.msra.mxu0 0.0
  %508 = vmatprep.subr.mxu0 0.0
  %509 = vmatpush2.msra.mxu0 0.0
  %510 = vmatprep.subr.mxu0 0.0
  %511 = vmatpush2.msra.mxu0 0.0
  %512 = vmatprep.subr.mxu0 0.0
  %513 = vmatpush2.msra.mxu0 0.0
  %514 = vmatprep.subr.mxu0 0.0
  %515 = vmatpush2.msra.mxu0 0.0
  %516 = vmatprep.subr.mxu0 0.0
  %517 = vmatpush2.msra.mxu0 0.0
  %518 = vmatprep.subr.mxu0 0.0
  %519 = vmatpush2.msra.mxu0 0.0
  %520 = vmatprep.subr.mxu0 0.0
  %521 = vmatpush2.msra.mxu0 0.0
  %522 = vmatprep.mubr.f32.mxu0 0.0
  %523 = vmatmul.mubr.f32.gmra.mxu0 %v453
  %v524 = vpop.f32.mrf.mxu0
  %v525 = vadd.f32 0.0, %v524
  %v526 = vpop.f32.mrf.mxu0
  %527 = vmatprep.mubr.f32.mxu0 0.0
  %528 = vmatmul.mubr.f32.gmra.mxu0 %v456
  %v529 = vpop.f32.mrf.mxu0
  %v530 = vadd.f32 0.0, %v529
  %v531 = vpop.f32.mrf.mxu0
  %532 = vdwg.mxu0
  %533 = vxpose.xlu0.b32.start [1/16] %v525, 128
  %534 = vxpose.xlu0.b32.cont [2/16] %v530, 128
  %535 = vxpose.xlu0.b32.cont [3/16] 0.0, 128
  %536 = vxpose.xlu0.b32.cont [4/16] 0.0, 128
  %537 = vxpose.xlu0.b32.cont [5/16] 0.0, 128
  %538 = vxpose.xlu0.b32.cont [6/16] 0.0, 128
  %539 = vxpose.xlu0.b32.cont [7/16] 0.0, 128
  %540 = vxpose.xlu0.b32.cont [8/16] 0.0, 128
  %541 = vxpose.xlu0.b32.cont [9/16] 0.0, 128
  %542 = vxpose.xlu0.b32.cont [10/16] 0.0, 128
  %543 = vxpose.xlu0.b32.cont [11/16] 0.0, 128
  %544 = vxpose.xlu0.b32.cont [12/16] 0.0, 128
  %545 = vxpose.xlu0.b32.cont [13/16] 0.0, 128
  %546 = vxpose.xlu0.b32.cont [14/16] 0.0, 128
  %547 = vxpose.xlu0.b32.cont [15/16] 0.0, 128
  %548 = vxpose.xlu0.b32.end [16/16] 0.0, 128
  %v549 = vpop.trf.xlu0
  %v550 = vpop.trf.xlu0
  %v551 = vpop.trf.xlu0
  %v552 = vpop.trf.xlu0
  %v553 = vpop.trf.xlu0
  %v554 = vpop.trf.xlu0
  %v555 = vpop.trf.xlu0
  %v556 = vpop.trf.xlu0
  %v557 = vpop.trf.xlu0
  %v558 = vpop.trf.xlu0
  %v559 = vpop.trf.xlu0
  %v560 = vpop.trf.xlu0
  %v561 = vpop.trf.xlu0
  %v562 = vpop.trf.xlu0
  %v563 = vpop.trf.xlu0
  %v564 = vpop.trf.xlu0
  %566 = vset.pattern.permute.xlu0 1
  %567 = vperm.xlu0 %566, %v525
  %v568 = vpop.permute.xlu0 %567
  %571 = vset.pattern.permute.xlu0 1
  %572 = vperm.xlu0 %571, %v530
  %v573 = vpop.permute.xlu0 %572
  %v575 = vlaneseq
  %v576 = vshrl.u32 %v575, 7
  %v577 = vsub.s32 0, %v576
  %v578 = vrot.slane %v549, %v577
  %v579 = vadd.f32 %v568, %v578
  %v580 = vadd.f32 %v573, %v578
  %s581 = scalar_lea.vmem %s4, 16
  %v582 = vld [vmem:[%s581] sm:$0xff]
  %v583 = vld [vmem:[%s581 + $0x8] sm:$0xff]
  %v584 = vadd.f32 %v579, %v582
  %v585 = vadd.f32 %v580, %v583
  %v586 = vmul.f32 %v584, 0.2
  %v587 = vmul.f32 %v585, 0.2
  %v588 = vmax.f32 %v584, %v586
  %v589 = vmax.f32 %v585, %v587
  %v590 = vsel %vm253, %v588, -inf
  %591 = vmax.xlane.f32.xlu0 %v590
  %v592 = vpop.xlane.xlu0 %591
  %v593 = vsel %vm253, %v589, -inf
  %594 = vmax.xlane.f32.xlu0 %v593
  %v595 = vpop.xlane.xlu0 %594
  %v596 = vsub.f32 %v588, %v592
  %v597 = vsub.f32 %v589, %v595
  %v598 = vmul.f32 %v596, 1.442695
  %v599 = vpow.pop %v598
  %v600 = vmul.f32 %v597, 1.442695
  %v601 = vpow.pop %v600
  %v602 = vsel %vm253, %v599, 0.0
  %603 = vadd.xlane.f32.xlu0 %v602
  %v604 = vpop.xlane.xlu0 %603
  %v605 = vsel %vm253, %v601, 0.0
  %606 = vadd.xlane.f32.xlu0 %v605
  %v607 = vpop.xlane.xlu0 %606
  %v608 = vrcp.pop %v604
  %v609 = vrcp.pop %v607
  %v610 = vmul.f32 %v599, %v608
  %v611 = vmul.f32 %v601, %v609
  %v612 = vlaneseq
  %v613 = vshrl.u32 %v612, 7
  %v614 = vsub.s32 1, %v613
  %v615 = vrot.slane %v23, %v614
  %v617 = vsel %vm253, %v610, 0
  %v620 = vsel %vm253, %v611, 0
  %622 = vmatprep.subr.mxu0 0.0
  %623 = vmatpush1.msra.mxu0 0.0
  %624 = vmatprep.subr.mxu0 0.0
  %625 = vmatpush1.msra.mxu0 0.0
  %626 = vmatprep.subr.mxu0 0.0
  %627 = vmatpush1.msra.mxu0 0.0
  %628 = vmatprep.subr.mxu0 0.0
  %629 = vmatpush1.msra.mxu0 0.0
  %630 = vmatprep.subr.mxu0 0.0
  %631 = vmatpush1.msra.mxu0 0.0
  %632 = vmatprep.subr.mxu0 0.0
  %633 = vmatpush1.msra.mxu0 0.0
  %634 = vmatprep.subr.mxu0 0.0
  %635 = vmatpush1.msra.mxu0 0.0
  %636 = vmatprep.subr.mxu0 0.0
  %637 = vmatpush1.msra.mxu0 0.0
  %638 = vmatprep.subr.mxu0 0.0
  %639 = vmatpush1.msra.mxu0 0.0
  %640 = vmatprep.subr.mxu0 0.0
  %641 = vmatpush1.msra.mxu0 0.0
  %642 = vmatprep.subr.mxu0 0.0
  %643 = vmatpush1.msra.mxu0 0.0
  %644 = vmatprep.subr.mxu0 0.0
  %645 = vmatpush1.msra.mxu0 0.0
  %646 = vmatprep.subr.mxu0 0.0
  %647 = vmatpush1.msra.mxu0 0.0
  %648 = vmatprep.subr.mxu0 0.0
  %649 = vmatpush1.msra.mxu0 0.0
  %650 = vmatprep.subr.mxu0 0.0
  %651 = vmatpush1.msra.mxu0 %v444
  %652 = vmatprep.subr.mxu0 0.0
  %653 = vmatpush1.msra.mxu0 %v439
  %654 = vmatprep.subr.mxu0 0.0
  %655 = vmatpush2.msra.mxu0 0.0
  %656 = vmatprep.subr.mxu0 0.0
  %657 = vmatpush2.msra.mxu0 0.0
  %658 = vmatprep.subr.mxu0 0.0
  %659 = vmatpush2.msra.mxu0 0.0
  %660 = vmatprep.subr.mxu0 0.0
  %661 = vmatpush2.msra.mxu0 0.0
  %662 = vmatprep.subr.mxu0 0.0
  %663 = vmatpush2.msra.mxu0 0.0
  %664 = vmatprep.subr.mxu0 0.0
  %665 = vmatpush2.msra.mxu0 0.0
  %666 = vmatprep.subr.mxu0 0.0
  %667 = vmatpush2.msra.mxu0 0.0
  %668 = vmatprep.subr.mxu0 0.0
  %669 = vmatpush2.msra.mxu0 0.0
  %670 = vmatprep.subr.mxu0 0.0
  %671 = vmatpush2.msra.mxu0 0.0
  %672 = vmatprep.subr.mxu0 0.0
  %673 = vmatpush2.msra.mxu0 0.0
  %674 = vmatprep.subr.mxu0 0.0
  %675 = vmatpush2.msra.mxu0 0.0
  %676 = vmatprep.subr.mxu0 0.0
  %677 = vmatpush2.msra.mxu0 0.0
  %678 = vmatprep.subr.mxu0 0.0
  %679 = vmatpush2.msra.mxu0 0.0
  %680 = vmatprep.subr.mxu0 0.0
  %681 = vmatpush2.msra.mxu0 0.0
  %682 = vmatprep.subr.mxu0 0.0
  %683 = vmatpush2.msra.mxu0 0.0
  %684 = vmatprep.subr.mxu0 0.0
  %685 = vmatpush2.msra.mxu0 0.0
  %686 = vmatprep.mubr.f32.mxu0 0.0
  %687 = vmatmul.mubr.f32.gmra.mxu0 %v617
  %v688 = vpop.f32.mrf.mxu0
  %v689 = vadd.f32 %v615, %v688
  %v690 = vpop.f32.mrf.mxu0
  %691 = vmatprep.mubr.f32.mxu0 0.0
  %692 = vmatmul.mubr.f32.gmra.mxu0 %v620
  %v693 = vpop.f32.mrf.mxu0
  %v694 = vadd.f32 %v615, %v693
  %v695 = vpop.f32.mrf.mxu0
  %696 = vdwg.mxu0
  %s697 = scalar_lea.vmem %s1, 64
  %v698 = vld [vmem:[%s697] sm:$0xff]
  %v699 = vld [vmem:[%s697 + $0x8] sm:$0xff]
  %v700 = vld [vmem:[%s697 + $0x10] sm:$0xff]
  %v701 = vld [vmem:[%s697 + $0x18] sm:$0xff]
  %v703 = vsel %vm30, %v689, 0
  %v706 = vsel %vm30, %v694, 0
  %708 = vmatprep.subr.mxu0 0.0
  %709 = vmatpush1.msra.mxu0 0.0
  %710 = vmatprep.subr.mxu0 0.0
  %711 = vmatpush1.msra.mxu0 0.0
  %712 = vmatprep.subr.mxu0 0.0
  %713 = vmatpush1.msra.mxu0 0.0
  %714 = vmatprep.subr.mxu0 0.0
  %715 = vmatpush1.msra.mxu0 0.0
  %716 = vmatprep.subr.mxu0 0.0
  %717 = vmatpush1.msra.mxu0 0.0
  %718 = vmatprep.subr.mxu0 0.0
  %719 = vmatpush1.msra.mxu0 0.0
  %720 = vmatprep.subr.mxu0 0.0
  %721 = vmatpush1.msra.mxu0 0.0
  %722 = vmatprep.subr.mxu0 0.0
  %723 = vmatpush1.msra.mxu0 0.0
  %724 = vmatprep.subr.mxu0 0.0
  %725 = vmatpush1.msra.mxu0 0.0
  %726 = vmatprep.subr.mxu0 0.0
  %727 = vmatpush1.msra.mxu0 0.0
  %728 = vmatprep.subr.mxu0 0.0
  %729 = vmatpush1.msra.mxu0 0.0
  %730 = vmatprep.subr.mxu0 0.0
  %731 = vmatpush1.msra.mxu0 0.0
  %732 = vmatprep.subr.mxu0 0.0
  %733 = vmatpush1.msra.mxu0 %v701
  %734 = vmatprep.subr.mxu0 0.0
  %735 = vmatpush1.msra.mxu0 %v700
  %736 = vmatprep.subr.mxu0 0.0
  %737 = vmatpush1.msra.mxu0 %v699
  %738 = vmatprep.subr.mxu0 0.0
  %739 = vmatpush1.msra.mxu0 %v698
  %740 = vmatprep.subr.mxu0 0.0
  %741 = vmatpush2.msra.mxu0 0.0
  %742 = vmatprep.subr.mxu0 0.0
  %743 = vmatpush2.msra.mxu0 0.0
  %744 = vmatprep.subr.mxu0 0.0
  %745 = vmatpush2.msra.mxu0 0.0
  %746 = vmatprep.subr.mxu0 0.0
  %747 = vmatpush2.msra.mxu0 0.0
  %748 = vmatprep.subr.mxu0 0.0
  %749 = vmatpush2.msra.mxu0 0.0
  %750 = vmatprep.subr.mxu0 0.0
  %751 = vmatpush2.msra.mxu0 0.0
  %752 = vmatprep.subr.mxu0 0.0
  %753 = vmatpush2.msra.mxu0 0.0
  %754 = vmatprep.subr.mxu0 0.0
  %755 = vmatpush2.msra.mxu0 0.0
  %756 = vmatprep.subr.mxu0 0.0
  %757 = vmatpush2.msra.mxu0 0.0
  %758 = vmatprep.subr.mxu0 0.0
  %759 = vmatpush2.msra.mxu0 0.0
  %760 = vmatprep.subr.mxu0 0.0
  %761 = vmatpush2.msra.mxu0 0.0
  %762 = vmatprep.subr.mxu0 0.0
  %763 = vmatpush2.msra.mxu0 0.0
  %764 = vmatprep.subr.mxu0 0.0
  %765 = vmatpush2.msra.mxu0 0.0
  %766 = vmatprep.subr.mxu0 0.0
  %767 = vmatpush2.msra.mxu0 0.0
  %768 = vmatprep.subr.mxu0 0.0
  %769 = vmatpush2.msra.mxu0 0.0
  %770 = vmatprep.subr.mxu0 0.0
  %771 = vmatpush2.msra.mxu0 0.0
  %772 = vmatprep.mubr.f32.mxu0 0.0
  %773 = vmatmul.mubr.f32.gmra.mxu0 %v703
  %v774 = vpop.f32.mrf.mxu0
  %v775 = vadd.f32 0.0, %v774
  %v776 = vpop.f32.mrf.mxu0
  %777 = vmatprep.mubr.f32.mxu0 0.0
  %778 = vmatmul.mubr.f32.gmra.mxu0 %v706
  %v779 = vpop.f32.mrf.mxu0
  %v780 = vadd.f32 0.0, %v779
  %v781 = vpop.f32.mrf.mxu0
  %782 = vdwg.mxu0
  %s783 = scalar_lea.vmem %s2, 64
  %v784 = vld [vmem:[%s783] sm:$0xff]
  %v785 = vld [vmem:[%s783 + $0x8] sm:$0xff]
  %v786 = vld [vmem:[%s783 + $0x10] sm:$0xff]
  %v787 = vld [vmem:[%s783 + $0x18] sm:$0xff]
  %v789 = vsel %vm30, %v775, 0
  %v792 = vsel %vm30, %v780, 0
  %794 = vmatprep.subr.mxu0 0.0
  %795 = vmatpush1.msra.mxu0 0.0
  %796 = vmatprep.subr.mxu0 0.0
  %797 = vmatpush1.msra.mxu0 0.0
  %798 = vmatprep.subr.mxu0 0.0
  %799 = vmatpush1.msra.mxu0 0.0
  %800 = vmatprep.subr.mxu0 0.0
  %801 = vmatpush1.msra.mxu0 0.0
  %802 = vmatprep.subr.mxu0 0.0
  %803 = vmatpush1.msra.mxu0 0.0
  %804 = vmatprep.subr.mxu0 0.0
  %805 = vmatpush1.msra.mxu0 0.0
  %806 = vmatprep.subr.mxu0 0.0
  %807 = vmatpush1.msra.mxu0 0.0
  %808 = vmatprep.subr.mxu0 0.0
  %809 = vmatpush1.msra.mxu0 0.0
  %810 = vmatprep.subr.mxu0 0.0
  %811 = vmatpush1.msra.mxu0 0.0
  %812 = vmatprep.subr.mxu0 0.0
  %813 = vmatpush1.msra.mxu0 0.0
  %814 = vmatprep.subr.mxu0 0.0
  %815 = vmatpush1.msra.mxu0 0.0
  %816 = vmatprep.subr.mxu0 0.0
  %817 = vmatpush1.msra.mxu0 0.0
  %818 = vmatprep.subr.mxu0 0.0
  %819 = vmatpush1.msra.mxu0 %v787
  %820 = vmatprep.subr.mxu0 0.0
  %821 = vmatpush1.msra.mxu0 %v786
  %822 = vmatprep.subr.mxu0 0.0
  %823 = vmatpush1.msra.mxu0 %v785
  %824 = vmatprep.subr.mxu0 0.0
  %825 = vmatpush1.msra.mxu0 %v784
  %826 = vmatprep.subr.mxu0 0.0
  %827 = vmatpush2.msra.mxu0 0.0
  %828 = vmatprep.subr.mxu0 0.0
  %829 = vmatpush2.msra.mxu0 0.0
  %830 = vmatprep.subr.mxu0 0.0
  %831 = vmatpush2.msra.mxu0 0.0
  %832 = vmatprep.subr.mxu0 0.0
  %833 = vmatpush2.msra.mxu0 0.0
  %834 = vmatprep.subr.mxu0 0.0
  %835 = vmatpush2.msra.mxu0 0.0
  %836 = vmatprep.subr.mxu0 0.0
  %837 = vmatpush2.msra.mxu0 0.0
  %838 = vmatprep.subr.mxu0 0.0
  %839 = vmatpush2.msra.mxu0 0.0
  %840 = vmatprep.subr.mxu0 0.0
  %841 = vmatpush2.msra.mxu0 0.0
  %842 = vmatprep.subr.mxu0 0.0
  %843 = vmatpush2.msra.mxu0 0.0
  %844 = vmatprep.subr.mxu0 0.0
  %845 = vmatpush2.msra.mxu0 0.0
  %846 = vmatprep.subr.mxu0 0.0
  %847 = vmatpush2.msra.mxu0 0.0
  %848 = vmatprep.subr.mxu0 0.0
  %849 = vmatpush2.msra.mxu0 0.0
  %850 = vmatprep.subr.mxu0 0.0
  %851 = vmatpush2.msra.mxu0 0.0
  %852 = vmatprep.subr.mxu0 0.0
  %853 = vmatpush2.msra.mxu0 0.0
  %854 = vmatprep.subr.mxu0 0.0
  %855 = vmatpush2.msra.mxu0 0.0
  %856 = vmatprep.subr.mxu0 0.0
  %857 = vmatpush2.msra.mxu0 0.0
  %858 = vmatprep.mubr.f32.mxu0 0.0
  %859 = vmatmul.mubr.f32.gmra.mxu0 %v789
  %v860 = vpop.f32.mrf.mxu0
  %v861 = vadd.f32 0.0, %v860
  %v862 = vpop.f32.mrf.mxu0
  %863 = vmatprep.mubr.f32.mxu0 0.0
  %864 = vmatmul.mubr.f32.gmra.mxu0 %v792
  %v865 = vpop.f32.mrf.mxu0
  %v866 = vadd.f32 0.0, %v865
  %v867 = vpop.f32.mrf.mxu0
  %868 = vdwg.mxu0
  %869 = vxpose.xlu0.b32.start [1/16] %v861, 128
  %870 = vxpose.xlu0.b32.cont [2/16] %v866, 128
  %871 = vxpose.xlu0.b32.cont [3/16] 0.0, 128
  %872 = vxpose.xlu0.b32.cont [4/16] 0.0, 128
  %873 = vxpose.xlu0.b32.cont [5/16] 0.0, 128
  %874 = vxpose.xlu0.b32.cont [6/16] 0.0, 128
  %875 = vxpose.xlu0.b32.cont [7/16] 0.0, 128
  %876 = vxpose.xlu0.b32.cont [8/16] 0.0, 128
  %877 = vxpose.xlu0.b32.cont [9/16] 0.0, 128
  %878 = vxpose.xlu0.b32.cont [10/16] 0.0, 128
  %879 = vxpose.xlu0.b32.cont [11/16] 0.0, 128
  %880 = vxpose.xlu0.b32.cont [12/16] 0.0, 128
  %881 = vxpose.xlu0.b32.cont [13/16] 0.0, 128
  %882 = vxpose.xlu0.b32.cont [14/16] 0.0, 128
  %883 = vxpose.xlu0.b32.cont [15/16] 0.0, 128
  %884 = vxpose.xlu0.b32.end [16/16] 0.0, 128
  %v885 = vpop.trf.xlu0
  %v886 = vpop.trf.xlu0
  %v887 = vpop.trf.xlu0
  %v888 = vpop.trf.xlu0
  %v889 = vpop.trf.xlu0
  %v890 = vpop.trf.xlu0
  %v891 = vpop.trf.xlu0
  %v892 = vpop.trf.xlu0
  %v893 = vpop.trf.xlu0
  %v894 = vpop.trf.xlu0
  %v895 = vpop.trf.xlu0
  %v896 = vpop.trf.xlu0
  %v897 = vpop.trf.xlu0
  %v898 = vpop.trf.xlu0
  %v899 = vpop.trf.xlu0
  %v900 = vpop.trf.xlu0
  %902 = vset.pattern.permute.xlu0 1
  %903 = vperm.xlu0 %902, %v861
  %v904 = vpop.permute.xlu0 %903
  %907 = vset.pattern.permute.xlu0 1
  %908 = vperm.xlu0 %907, %v866
  %v909 = vpop.permute.xlu0 %908
  %v911 = vlaneseq
  %v912 = vshrl.u32 %v911, 7
  %v913 = vsub.s32 0, %v912
  %v914 = vrot.slane %v885, %v913
  %v915 = vadd.f32 %v904, %v914
  %v916 = vadd.f32 %v909, %v914
  %s917 = scalar_lea.vmem %s4, 32
  %v918 = vld [vmem:[%s917] sm:$0xff]
  %v919 = vld [vmem:[%s917 + $0x8] sm:$0xff]
  %v920 = vadd.f32 %v915, %v918
  %v921 = vadd.f32 %v916, %v919
  %v922 = vmul.f32 %v920, 0.2
  %v923 = vmul.f32 %v921, 0.2
  %v924 = vmax.f32 %v920, %v922
  %v925 = vmax.f32 %v921, %v923
  %v926 = vsel %vm253, %v924, -inf
  %927 = vmax.xlane.f32.xlu0 %v926
  %v928 = vpop.xlane.xlu0 %927
  %v929 = vsel %vm253, %v925, -inf
  %930 = vmax.xlane.f32.xlu0 %v929
  %v931 = vpop.xlane.xlu0 %930
  %v932 = vsub.f32 %v924, %v928
  %v933 = vsub.f32 %v925, %v931
  %v934 = vmul.f32 %v932, 1.442695
  %v935 = vpow.pop %v934
  %v936 = vmul.f32 %v933, 1.442695
  %v937 = vpow.pop %v936
  %v938 = vsel %vm253, %v935, 0.0
  %939 = vadd.xlane.f32.xlu0 %v938
  %v940 = vpop.xlane.xlu0 %939
  %v941 = vsel %vm253, %v937, 0.0
  %942 = vadd.xlane.f32.xlu0 %v941
  %v943 = vpop.xlane.xlu0 %942
  %v944 = vrcp.pop %v940
  %v945 = vrcp.pop %v943
  %v946 = vmul.f32 %v935, %v944
  %v947 = vmul.f32 %v937, %v945
  %v948 = vlaneseq
  %v949 = vshrl.u32 %v948, 7
  %v950 = vsub.s32 2, %v949
  %v951 = vrot.slane %v23, %v950
  %v953 = vsel %vm253, %v946, 0
  %v956 = vsel %vm253, %v947, 0
  %958 = vmatprep.subr.mxu0 0.0
  %959 = vmatpush1.msra.mxu0 0.0
  %960 = vmatprep.subr.mxu0 0.0
  %961 = vmatpush1.msra.mxu0 0.0
  %962 = vmatprep.subr.mxu0 0.0
  %963 = vmatpush1.msra.mxu0 0.0
  %964 = vmatprep.subr.mxu0 0.0
  %965 = vmatpush1.msra.mxu0 0.0
  %966 = vmatprep.subr.mxu0 0.0
  %967 = vmatpush1.msra.mxu0 0.0
  %968 = vmatprep.subr.mxu0 0.0
  %969 = vmatpush1.msra.mxu0 0.0
  %970 = vmatprep.subr.mxu0 0.0
  %971 = vmatpush1.msra.mxu0 0.0
  %972 = vmatprep.subr.mxu0 0.0
  %973 = vmatpush1.msra.mxu0 0.0
  %974 = vmatprep.subr.mxu0 0.0
  %975 = vmatpush1.msra.mxu0 0.0
  %976 = vmatprep.subr.mxu0 0.0
  %977 = vmatpush1.msra.mxu0 0.0
  %978 = vmatprep.subr.mxu0 0.0
  %979 = vmatpush1.msra.mxu0 0.0
  %980 = vmatprep.subr.mxu0 0.0
  %981 = vmatpush1.msra.mxu0 0.0
  %982 = vmatprep.subr.mxu0 0.0
  %983 = vmatpush1.msra.mxu0 0.0
  %984 = vmatprep.subr.mxu0 0.0
  %985 = vmatpush1.msra.mxu0 0.0
  %986 = vmatprep.subr.mxu0 0.0
  %987 = vmatpush1.msra.mxu0 %v780
  %988 = vmatprep.subr.mxu0 0.0
  %989 = vmatpush1.msra.mxu0 %v775
  %990 = vmatprep.subr.mxu0 0.0
  %991 = vmatpush2.msra.mxu0 0.0
  %992 = vmatprep.subr.mxu0 0.0
  %993 = vmatpush2.msra.mxu0 0.0
  %994 = vmatprep.subr.mxu0 0.0
  %995 = vmatpush2.msra.mxu0 0.0
  %996 = vmatprep.subr.mxu0 0.0
  %997 = vmatpush2.msra.mxu0 0.0
  %998 = vmatprep.subr.mxu0 0.0
  %999 = vmatpush2.msra.mxu0 0.0
  %1000 = vmatprep.subr.mxu0 0.0
  %1001 = vmatpush2.msra.mxu0 0.0
  %1002 = vmatprep.subr.mxu0 0.0
  %1003 = vmatpush2.msra.mxu0 0.0
  %1004 = vmatprep.subr.mxu0 0.0
  %1005 = vmatpush2.msra.mxu0 0.0
  %1006 = vmatprep.subr.mxu0 0.0
  %1007 = vmatpush2.msra.mxu0 0.0
  %1008 = vmatprep.subr.mxu0 0.0
  %1009 = vmatpush2.msra.mxu0 0.0
  %1010 = vmatprep.subr.mxu0 0.0
  %1011 = vmatpush2.msra.mxu0 0.0
  %1012 = vmatprep.subr.mxu0 0.0
  %1013 = vmatpush2.msra.mxu0 0.0
  %1014 = vmatprep.subr.mxu0 0.0
  %1015 = vmatpush2.msra.mxu0 0.0
  %1016 = vmatprep.subr.mxu0 0.0
  %1017 = vmatpush2.msra.mxu0 0.0
  %1018 = vmatprep.subr.mxu0 0.0
  %1019 = vmatpush2.msra.mxu0 0.0
  %1020 = vmatprep.subr.mxu0 0.0
  %1021 = vmatpush2.msra.mxu0 0.0
  %1022 = vmatprep.mubr.f32.mxu0 0.0
  %1023 = vmatmul.mubr.f32.gmra.mxu0 %v953
  %v1024 = vpop.f32.mrf.mxu0
  %v1025 = vadd.f32 %v951, %v1024
  %v1026 = vpop.f32.mrf.mxu0
  %1027 = vmatprep.mubr.f32.mxu0 0.0
  %1028 = vmatmul.mubr.f32.gmra.mxu0 %v956
  %v1029 = vpop.f32.mrf.mxu0
  %v1030 = vadd.f32 %v951, %v1029
  %v1031 = vpop.f32.mrf.mxu0
  %1032 = vdwg.mxu0
  %v1033 = vlaneseq
  %v1034 = vshrl.u32 %v1033, 7
  %v1035 = vsub.s32 3, %v1034
  %v1036 = vrot.slane %v23, %v1035
  %v1037 = vmul.f32 %v353, %v1036
  %v1038 = vmul.f32 %v358, %v1036
  %v1039 = vlaneseq
  %v1040 = vshrl.u32 %v1039, 7
  %v1041 = vsub.s32 4, %v1040
  %v1042 = vrot.slane %v23, %v1041
  %v1043 = vmul.f32 %v689, %v1042
  %v1044 = vmul.f32 %v694, %v1042
  %v1045 = vadd.f32 %v1037, %v1043
  %v1046 = vadd.f32 %v1038, %v1044
  %v1047 = vlaneseq
  %v1048 = vshrl.u32 %v1047, 7
  %v1049 = vsub.s32 5, %v1048
  %v1050 = vrot.slane %v23, %v1049
  %v1051 = vmul.f32 %v1025, %v1050
  %v1052 = vmul.f32 %v1030, %v1050
  %v1053 = vadd.f32 %v1045, %v1051
  %v1054 = vadd.f32 %v1046, %v1052
  %v1055 = vld [vmem:[%s5] sm:$0x3]
  %v1057 = vsel %vm253, %v1055, 0
  %1059 = vmatprep.subr.mxu0 0.0
  %1060 = vmatpush1.msra.mxu0 0.0
  %1061 = vmatprep.subr.mxu0 0.0
  %1062 = vmatpush1.msra.mxu0 0.0
  %1063 = vmatprep.subr.mxu0 0.0
  %1064 = vmatpush1.msra.mxu0 0.0
  %1065 = vmatprep.subr.mxu0 0.0
  %1066 = vmatpush1.msra.mxu0 0.0
  %1067 = vmatprep.subr.mxu0 0.0
  %1068 = vmatpush1.msra.mxu0 0.0
  %1069 = vmatprep.subr.mxu0 0.0
  %1070 = vmatpush1.msra.mxu0 0.0
  %1071 = vmatprep.subr.mxu0 0.0
  %1072 = vmatpush1.msra.mxu0 0.0
  %1073 = vmatprep.subr.mxu0 0.0
  %1074 = vmatpush1.msra.mxu0 0.0
  %1075 = vmatprep.subr.mxu0 0.0
  %1076 = vmatpush1.msra.mxu0 0.0
  %1077 = vmatprep.subr.mxu0 0.0
  %1078 = vmatpush1.msra.mxu0 0.0
  %1079 = vmatprep.subr.mxu0 0.0
  %1080 = vmatpush1.msra.mxu0 0.0
  %1081 = vmatprep.subr.mxu0 0.0
  %1082 = vmatpush1.msra.mxu0 0.0
  %1083 = vmatprep.subr.mxu0 0.0
  %1084 = vmatpush1.msra.mxu0 0.0
  %1085 = vmatprep.subr.mxu0 0.0
  %1086 = vmatpush1.msra.mxu0 0.0
  %1087 = vmatprep.subr.mxu0 0.0
  %1088 = vmatpush1.msra.mxu0 %v1054
  %1089 = vmatprep.subr.mxu0 0.0
  %1090 = vmatpush1.msra.mxu0 %v1053
  %1091 = vmatprep.subr.mxu0 0.0
  %1092 = vmatpush2.msra.mxu0 0.0
  %1093 = vmatprep.subr.mxu0 0.0
  %1094 = vmatpush2.msra.mxu0 0.0
  %1095 = vmatprep.subr.mxu0 0.0
  %1096 = vmatpush2.msra.mxu0 0.0
  %1097 = vmatprep.subr.mxu0 0.0
  %1098 = vmatpush2.msra.mxu0 0.0
  %1099 = vmatprep.subr.mxu0 0.0
  %1100 = vmatpush2.msra.mxu0 0.0
  %1101 = vmatprep.subr.mxu0 0.0
  %1102 = vmatpush2.msra.mxu0 0.0
  %1103 = vmatprep.subr.mxu0 0.0
  %1104 = vmatpush2.msra.mxu0 0.0
  %1105 = vmatprep.subr.mxu0 0.0
  %1106 = vmatpush2.msra.mxu0 0.0
  %1107 = vmatprep.subr.mxu0 0.0
  %1108 = vmatpush2.msra.mxu0 0.0
  %1109 = vmatprep.subr.mxu0 0.0
  %1110 = vmatpush2.msra.mxu0 0.0
  %1111 = vmatprep.subr.mxu0 0.0
  %1112 = vmatpush2.msra.mxu0 0.0
  %1113 = vmatprep.subr.mxu0 0.0
  %1114 = vmatpush2.msra.mxu0 0.0
  %1115 = vmatprep.subr.mxu0 0.0
  %1116 = vmatpush2.msra.mxu0 0.0
  %1117 = vmatprep.subr.mxu0 0.0
  %1118 = vmatpush2.msra.mxu0 0.0
  %1119 = vmatprep.subr.mxu0 0.0
  %1120 = vmatpush2.msra.mxu0 0.0
  %1121 = vmatprep.subr.mxu0 0.0
  %1122 = vmatpush2.msra.mxu0 0.0
  %1123 = vmatprep.mubr.f32.mxu0 0.0
  %1124 = vmatmul.mubr.f32.gmra.mxu0 %v1057
  %v1125 = vpop.f32.mrf.mxu0
  %v1126 = vadd.f32 0.0, %v1125
  %v1127 = vpop.f32.mrf.mxu0
  %1128 = vdwg.mxu0
  %vm1129 = vcmask 254976
  %v1130 = vsel %vm1129, %v1126, 0.0
  %1131 = vadd.xlane.f32.xlu0 %v1130
  %v1132 = vpop.xlane.xlu0 %1131
  %v1133 = vlaneseq
  %v1134 = vshrl.u32 %v1133, 7
  %v1135 = vsub.s32 6, %v1134
  %v1136 = vrot.slane %v23, %v1135
  %v1137 = vadd.f32 %v1132, %v1136
  %vm1138 = vcmask 1024
  %1139 = vst.msk [vmem:[%s6] sm:$0x3] %vm1138, %v1137
  // Predicated region
  $region26: #{gat_model_forward.1} parent=0 // pred_check
    _
  $region27: #{gat_model_forward.1} parent=0 // pred_check_branch
    %1141 = sbr.rel (0) target = $region29
  $region28: #{gat_model_forward.1} parent=0 // pred_region
    _
  $region29: #{gat_model_forward.1} parent=0 // pred_fallthru
    _
  // Predicated region
  $region30: #{gat_model_forward.1} parent=0 // pred_check
    _
  $region31: #{gat_model_forward.1} parent=0 // pred_check_branch
    %1143 = sbr.rel (0) target = $region33
  $region32: #{gat_model_forward.1} parent=0 // pred_region
    _
  $region33: #{gat_model_forward.1} parent=0 // pred_fallthru
    _

</llo_original>
